<compile_context>
chip_gen: v5e
topology: v5e:2x2
jax: 0.10.0
libtpu: 0.0.40
codegen_flags: <defaults>
</compile_context>

<pallas_src>
import jax
import jax.numpy as jnp
from jax.experimental import pallas as pl
from jax.experimental.pallas import tpu as pltpu


def _gumbel_race_kernel(logits_ref, bits_ref, out_ref):
    """One grid step samples a block of S_BLK one-hot categorical draws."""
    # Per-block class weights: w_i = exp(-(logits_i - max_j logits_j)) in (0, 1].
    logits = logits_ref[...].astype(jnp.float32)                     # (B, C)
    w = jnp.exp(jnp.max(logits, axis=-1, keepdims=True) - logits)    # (B, C)

    # int32 random bits -> uniform in (0, 1): low 24 bits + 0.5, scaled.
    bits = bits_ref[...]                                             # (S, B, C) int32
    u24 = (bits & 0x00FFFFFF).astype(jnp.float32)
    u = (u24 + jnp.float32(0.5)) * jnp.float32(1.0 / (1 << 24))      # never 0 or 1

    # Exponential race: smallest E_i * w_i wins with prob softmax(logits)_i.
    e = -jnp.log(u)                                                  # Exp(1), 1 log/elem
    key = e * w[None, :, :]                                          # (S, B, C)

    # Exactly-one-hot via first-index-of-minimum (tie-safe).
    num_classes = key.shape[-1]
    iota = jax.lax.broadcasted_iota(jnp.int32, key.shape, key.ndim - 1)
    m = jnp.min(key, axis=-1, keepdims=True)
    first = jnp.min(
        jnp.where(key <= m, iota, jnp.int32(num_classes)),
        axis=-1, keepdims=True)
    out_ref[...] = (iota == first).astype(out_ref.dtype)


def method_forward(logits: jax.Array, n: int, key: jax.Array,
                   sample_block: int | None = None) -> jax.Array:
    """Equivalent of Method.forward(OneHotCategorical(logits)) with n samples.

    Returns float32 one-hot samples of shape [n, batch, classes].
    """
    B, C = logits.shape

    # Block size: big enough to amortize per-grid-step overhead, small enough
    # that (bits-in + one-hot-out), double buffered, stays far under the scoped
    # VMEM limit on every generation (blocks capped at ~2 MiB each).
    bytes_per_sample = B * C * 4
    if sample_block is None:
        sample_block = max(1, min(n, (2 << 20) // bytes_per_sample))
    n_blocks = pl.cdiv(n, sample_block)
    n_pad = n_blocks * sample_block

    # Entropy generated once on the host/XLA side, streamed through the kernel.
    bits = jax.lax.bitcast_convert_type(
        jax.random.bits(key, (n_pad, B, C), dtype=jnp.uint32), jnp.int32)

    out = pl.pallas_call(
        _gumbel_race_kernel,
        out_shape=jax.ShapeDtypeStruct((n_pad, B, C), jnp.float32),
        grid_spec=pltpu.PrefetchScalarGridSpec(
            num_scalar_prefetch=0,
            grid=(n_blocks,),
            in_specs=[
                pl.BlockSpec((B, C), lambda i: (0, 0)),
                pl.BlockSpec((sample_block, B, C), lambda i: (i, 0, 0)),
            ],
            out_specs=pl.BlockSpec((sample_block, B, C), lambda i: (i, 0, 0)),
        ),
        compiler_params=pltpu.CompilerParams(
            dimension_semantics=("parallel",),  # samples are independent
        ),
    )(logits.astype(jnp.float32), bits)
    return out[:n]


if __name__ == "__main__":
    root = jax.random.PRNGKey(0)
    k_logits, k_sample = jax.random.split(root)

    batch, num_classes, n_samples = 8, 128, 4

    # Deterministic "distribution parameters" (logits of the OneHotCategorical).
    logits = jax.random.normal(k_logits, (batch, num_classes), dtype=jnp.float32)

    samples = method_forward(logits, n_samples, k_sample)
    samples = jax.block_until_ready(samples)

    # Structural checks: shape/dtype and exactly-one-hot rows.
    assert samples.shape == (n_samples, batch, num_classes)
    assert samples.dtype == jnp.float32
    row_sums = jnp.sum(samples, axis=-1)
    assert bool(jnp.all(row_sums == 1.0)), "every row must be exactly one-hot"
    assert bool(jnp.all((samples == 0.0) | (samples == 1.0)))

    # Cross-check against a pure-JAX reference of the same algorithm + bits
    # (n <= block cap here, so the kernel used the same unpadded bits array).
    ref_bits = jax.lax.bitcast_convert_type(
        jax.random.bits(k_sample, (n_samples, batch, num_classes),
                        dtype=jnp.uint32), jnp.int32)
    w_ref = jnp.exp(jnp.max(logits, axis=-1, keepdims=True) - logits)
    u_ref = ((ref_bits & 0x00FFFFFF).astype(jnp.float32) + 0.5) * (1.0 / (1 << 24))
    key_ref = -jnp.log(u_ref) * w_ref[None, :, :]
    idx_ref = jnp.argmin(key_ref, axis=-1)
    onehot_ref = jax.nn.one_hot(idx_ref, num_classes, dtype=jnp.float32)
    match_frac = jnp.mean(jnp.all(samples == onehot_ref, axis=-1))
    assert float(match_frac) > 0.9, f"kernel/reference agreement too low: {match_frac}"

    print("KERNEL_OK")
</pallas_src>

<mosaic_0001>
module attributes {stable_mosaic.version = 11 : i64} {
  func.func @_gumbel_race_kernel(%arg0: i32, %arg1: memref<8x128xf32, #tpu.memory_space<vmem>>, %arg2: memref<4x8x128xi32, #tpu.memory_space<vmem>>, %arg3: memref<4x8x128xf32, #tpu.memory_space<vmem>>) attributes {dimension_semantics = [#tpu.dimension_semantics<parallel>], iteration_bounds = array<i64: 1>, scalar_prefetch = 0 : i64, scratch_operands = 0 : i64, tpu.core_type = #tpu.core_type<tc>, window_params = [{pipeline_mode = #tpu.pipeline_mode<synchronous>, transform_indices = @transform_0, window_bounds = array<i64: 8, 128>}, {transform_indices = @transform_1, window_bounds = array<i64: 4, 8, 128>}, {transform_indices = @transform_2, window_bounds = array<i64: 4, 8, 128>}]} {
    %c0 = arith.constant 0 : index
    %c0_0 = arith.constant 0 : index
    %0 = vector.load %arg1[%c0, %c0_0] : memref<8x128xf32, #tpu.memory_space<vmem>>, vector<8x128xf32>
    %cst = arith.constant dense<0xFF800000> : vector<8xf32>
    %1 = vector.multi_reduction <maximumf>, %0, %cst [1] : vector<8x128xf32> to vector<8xf32>
    %2 = vector.shape_cast %1 : vector<8xf32> to vector<8x1xf32>
    %3 = vector.broadcast %2 : vector<8x1xf32> to vector<8x128xf32>
    %4 = arith.subf %3, %0 : vector<8x128xf32>
    %5 = math.exp %4 : vector<8x128xf32>
    %c0_1 = arith.constant 0 : index
    %c0_2 = arith.constant 0 : index
    %c0_3 = arith.constant 0 : index
    %6 = vector.load %arg2[%c0_1, %c0_2, %c0_3] : memref<4x8x128xi32, #tpu.memory_space<vmem>>, vector<4x8x128xi32>
    %c16777215_i32 = arith.constant 16777215 : i32
    %7 = vector.broadcast %c16777215_i32 : i32 to vector<4x8x128xi32>
    %8 = arith.andi %6, %7 : vector<4x8x128xi32>
    %9 = arith.sitofp %8 : vector<4x8x128xi32> to vector<4x8x128xf32>
    %cst_4 = arith.constant 5.000000e-01 : f32
    %10 = vector.broadcast %cst_4 : f32 to vector<4x8x128xf32>
    %11 = arith.addf %9, %10 : vector<4x8x128xf32>
    %cst_5 = arith.constant 5.96046448E-8 : f32
    %12 = vector.broadcast %cst_5 : f32 to vector<4x8x128xf32>
    %13 = arith.mulf %11, %12 : vector<4x8x128xf32>
    %14 = math.log %13 : vector<4x8x128xf32>
    %cst_6 = arith.constant 0.000000e+00 : f32
    %15 = vector.broadcast %cst_6 : f32 to vector<4x8x128xf32>
    %16 = arith.subf %15, %14 : vector<4x8x128xf32>
    %17 = vector.shape_cast %5 : vector<8x128xf32> to vector<1x8x128xf32>
    %18 = vector.broadcast %17 : vector<1x8x128xf32> to vector<4x8x128xf32>
    %19 = arith.mulf %16, %18 : vector<4x8x128xf32>
    %20 = tpu.iota {dimensions = array<i32: 2>} : vector<4x8x128xi32>
    %cst_7 = arith.constant dense<0x7F800000> : vector<4x8xf32>
    %21 = vector.multi_reduction <minimumf>, %19, %cst_7 [2] : vector<4x8x128xf32> to vector<4x8xf32>
    %22 = vector.shape_cast %21 : vector<4x8xf32> to vector<4x8x1xf32>
    %23 = vector.broadcast %22 : vector<4x8x1xf32> to vector<4x8x128xf32>
    %24 = arith.cmpf ole, %19, %23 : vector<4x8x128xf32>
    %c128_i32 = arith.constant 128 : i32
    %25 = vector.broadcast %c128_i32 : i32 to vector<4x8x128xi32>
    %26 = arith.select %24, %20, %25 : vector<4x8x128xi1>, vector<4x8x128xi32>
    %cst_8 = arith.constant dense<2147483647> : vector<4x8xi32>
    %27 = vector.multi_reduction <minsi>, %26, %cst_8 [2] : vector<4x8x128xi32> to vector<4x8xi32>
    %28 = vector.shape_cast %27 : vector<4x8xi32> to vector<4x8x1xi32>
    %29 = vector.broadcast %28 : vector<4x8x1xi32> to vector<4x8x128xi32>
    %30 = arith.cmpi eq, %20, %29 : vector<4x8x128xi32>
    %31 = arith.extui %30 : vector<4x8x128xi1> to vector<4x8x128xi32>
    %32 = arith.sitofp %31 : vector<4x8x128xi32> to vector<4x8x128xf32>
    %c0_9 = arith.constant 0 : index
    %c0_10 = arith.constant 0 : index
    %c0_11 = arith.constant 0 : index
    %33 = vector.load %arg3[%c0_9, %c0_10, %c0_11] : memref<4x8x128xf32, #tpu.memory_space<vmem>>, vector<4x8x128xf32>
    tpu.vector_store %arg3[%c0_9, %c0_10, %c0_11], %32 {strides = array<i32>} : memref<4x8x128xf32, #tpu.memory_space<vmem>>, vector<4x8x128xf32>,
    return
  }
  func.func @transform_0(%arg0: i32) -> (i32, i32) {
    %c0_i32 = arith.constant 0 : i32
    %c0_i32_0 = arith.constant 0 : i32
    %c0_i32_1 = arith.constant 0 : i32
    return %c0_i32, %c0_i32_0 : i32, i32
  }
  func.func @transform_1(%arg0: i32) -> (i32, i32, i32) {
    %c0_i32 = arith.constant 0 : i32
    %c0_i32_0 = arith.constant 0 : i32
    %c0_i32_1 = arith.constant 0 : i32
    return %arg0, %c0_i32, %c0_i32_0 : i32, i32, i32
  }
  func.func @transform_2(%arg0: i32) -> (i32, i32, i32) {
    %c0_i32 = arith.constant 0 : i32
    %c0_i32_0 = arith.constant 0 : i32
    %c0_i32_1 = arith.constant 0 : i32
    return %arg0, %c0_i32, %c0_i32_0 : i32, i32, i32
  }
}

</mosaic_0001>

<llo_original>
// kernel: tpu_custom_call.1
$region0: #{tpu_custom_call.1}
  #allocation0 [shape = 'u32[]', space=smem, size = 0x4, offset = 0x4, fixed_abs, tag = 'smem constant byte address 0x4 - core index']
  #allocation1 [shape = 'u32[72,128]{1,0:T(1,128)}', space=vmem, size = 0x9000, scoped, tag = 'internal scratch']
  %s0 = inlined_call_operand.hbm [shape: f32[8,128], index: 0, kind: input, shape index: {}]
  %s1 = inlined_call_operand.hbm [shape: s32[4,8,128], index: 1, kind: input, shape index: {}]
  %s2 = inlined_call_operand.hbm [shape: f32[4,8,128], index: 2, kind: output, shape index: {}]
  %s3 = sld [smem:[#allocation0]]
  $region26: #{tpu_custom_call.1} parent=0
    _
  %s5 = ssub.s32 1, %s3
  %s6 = scalar_select 0, %s5, %s3
  $region1: #{tpu_custom_call.1} parent=0
    #allocation2 [shape = 'u8[4096]{0}', space=vmem, size = 0x1000, scoped, tag = 'input window, operand 0, single buffered']
    #allocation3 [shape = 's32[1]{0}', space=sflag, size = 0x4, scoped, tag = 'scoped memory for tpu_custom_call.1']
    #allocation4 [shape = 's32[1]{0}', space=sflag, size = 0x4, scoped, tag = 'scoped memory for tpu_custom_call.1']
    #allocation5 [shape = 'u8[16384]{0}', space=vmem, size = 0x4000, scoped, tag = 'input window, operand 1, single buffered']
    #allocation6 [shape = 's32[1]{0}', space=sflag, size = 0x4, scoped, tag = 'scoped memory for tpu_custom_call.1']
    #allocation7 [shape = 'u8[16384]{0}', space=vmem, size = 0x4000, scoped, tag = 'output window, operand 0, single buffered']
    %7 = vsyncpa [#allocation3], 0
    %8 = vsyncpa [#allocation6], 0
    %9 = vsyncpa [#allocation4], 0
    // Predicated region
    $region2: #{tpu_custom_call.1} parent=1 // pred_check
      _
    $region3: #{tpu_custom_call.1} parent=1 // pred_check_branch
      %11 = sbr.rel (0) target = $region5
    $region4: #{tpu_custom_call.1} parent=1 // pred_region
      %13 = vsyncadd [#allocation3], 0
      %s15 = sshll.u32 %s0, 4
      %s16 = int_to_ptr.hbm [resolvable:$true] %s15
      %s17 = sshll.u32 [#allocation2], 4
      %s18 = int_to_ptr.vmem [resolvable:$true] %s17
      %20 = dma.hbm_to_vmem [thread:$0]  %s16, 128, %s18, [#allocation3]
    $region5: #{tpu_custom_call.1} parent=1 // pred_fallthru
      _
    // Predicated region
    $region6: #{tpu_custom_call.1} parent=1 // pred_check
      _
    $region7: #{tpu_custom_call.1} parent=1 // pred_check_branch
      %22 = sbr.rel (0) target = $region9
    $region8: #{tpu_custom_call.1} parent=1 // pred_region
      %24 = vsyncadd [#allocation6], 0
      %s25 = sshll.u32 %s1, 4
      %s26 = int_to_ptr.hbm [resolvable:$true] %s25
      %s27 = sshll.u32 [#allocation5], 4
      %s28 = int_to_ptr.vmem [resolvable:$true] %s27
      %33 = dma.hbm_to_vmem [thread:$0]  %s26, 512, %s28, [#allocation6], 128, 128, 8
    $region9: #{tpu_custom_call.1} parent=1 // pred_fallthru
      _
    // Predicated region
    $region10: #{tpu_custom_call.1} parent=1 // pred_check
      _
    $region11: #{tpu_custom_call.1} parent=1 // pred_check_branch
      %35 = sbr.rel (0) target = $region13
    $region12: #{tpu_custom_call.1} parent=1 // pred_region
      %37 = dma.done [#allocation3], 128
    $region13: #{tpu_custom_call.1} parent=1 // pred_fallthru
      _
    // Predicated region
    $region14: #{tpu_custom_call.1} parent=1 // pred_check
      _
    $region15: #{tpu_custom_call.1} parent=1 // pred_check_branch
      %39 = sbr.rel (0) target = $region17
    $region16: #{tpu_custom_call.1} parent=1 // pred_region
      %41 = dma.done [#allocation6], 512
    $region17: #{tpu_custom_call.1} parent=1 // pred_fallthru
      _
    %v42 = vld [vmem:[#allocation2] sm:$0xff]
    %43 = vmax.xlane.f32.xlu0 %v42
    %v44 = vpop.xlane.xlu0 %43
    %v45 = vsub.f32 %v44, %v42
    %v46 = vmul.f32 %v45, 1.442695
    %v47 = vpow.pop %v46
    %v48 = vld [vmem:[#allocation5] sm:$0xff]
    %v49 = vld [vmem:[#allocation5 + $0x8] sm:$0xff]
    %v50 = vld [vmem:[#allocation5 + $0x10] sm:$0xff]
    %v51 = vld [vmem:[#allocation5 + $0x18] sm:$0xff]
    %v52 = vand.u32 %v48, 16777215
    %v53 = vand.u32 %v49, 16777215
    %v54 = vand.u32 %v50, 16777215
    %v55 = vand.u32 %v51, 16777215
    %v56 = vcvt.s32.f32 %v52
    %v57 = vcvt.s32.f32 %v53
    %v58 = vcvt.s32.f32 %v54
    %v59 = vcvt.s32.f32 %v55
    %v60 = vadd.f32 %v56, 0.5
    %v61 = vadd.f32 %v57, 0.5
    %v62 = vadd.f32 %v58, 0.5
    %v63 = vadd.f32 %v59, 0.5
    %v64 = vmul.f32 %v60, 5.9604645e-08
    %v65 = vmul.f32 %v61, 5.9604645e-08
    %v66 = vmul.f32 %v62, 5.9604645e-08
    %v67 = vmul.f32 %v63, 5.9604645e-08
    %v68 = vlog2.pop %v64
    %v69 = vmul.f32 %v68, 0.6931472
    %v70 = vlog2.pop %v65
    %v71 = vmul.f32 %v70, 0.6931472
    %v72 = vlog2.pop %v66
    %v73 = vmul.f32 %v72, 0.6931472
    %v74 = vlog2.pop %v67
    %v75 = vmul.f32 %v74, 0.6931472
    %v76 = vsub.f32 0.0, %v69
    %v77 = vsub.f32 0.0, %v71
    %v78 = vsub.f32 0.0, %v73
    %v79 = vsub.f32 0.0, %v75
    %v80 = vmul.f32 %v76, %v47
    %v81 = vmul.f32 %v77, %v47
    %v82 = vmul.f32 %v78, %v47
    %v83 = vmul.f32 %v79, %v47
    %v84 = vlaneseq
    %v85 = vand.u32 %v84, 127
    %86 = vmin.xlane.f32.xlu0 %v80
    %v87 = vpop.xlane.xlu0 %86
    %88 = vmin.xlane.f32.xlu0 %v81
    %v89 = vpop.xlane.xlu0 %88
    %90 = vmin.xlane.f32.xlu0 %v82
    %v91 = vpop.xlane.xlu0 %90
    %92 = vmin.xlane.f32.xlu0 %v83
    %v93 = vpop.xlane.xlu0 %92
    %vm94 = vcmp.le.f32.partialorder %v80, %v87
    %vm95 = vcmp.le.f32.partialorder %v81, %v89
    %vm96 = vcmp.le.f32.partialorder %v82, %v91
    %vm97 = vcmp.le.f32.partialorder %v83, %v93
    %v98 = vsel %vm94, %v85, 128
    %v99 = vsel %vm95, %v85, 128
    %v100 = vsel %vm96, %v85, 128
    %v101 = vsel %vm97, %v85, 128
    %v102 = vand.u32 %v98, 65535
    %v103 = vshra.s32 %v98, 16
    %v104 = vcvt.s32.f32 %v102
    %v105 = vcvt.s32.f32 %v103
    %106 = vmin.xlane.f32.xlu0 %v105
    %v107 = vpop.xlane.xlu0 %106
    %vm108 = vcmp.eq.f32.partialorder %v105, %v107
    %v109 = vsel %vm108, %v104, inf
    %110 = vmin.xlane.f32.xlu0 %v109
    %v111 = vpop.xlane.xlu0 %110
    %v112 = vcvt.f32.s32 %v111
    %v113 = vcvt.f32.s32 %v107
    %v114 = vshll.u32 %v113, 16
    %v115 = vadd.s32 %v114, %v112
    %v116 = vand.u32 %v99, 65535
    %v117 = vshra.s32 %v99, 16
    %v118 = vcvt.s32.f32 %v116
    %v119 = vcvt.s32.f32 %v117
    %120 = vmin.xlane.f32.xlu0 %v119
    %v121 = vpop.xlane.xlu0 %120
    %vm122 = vcmp.eq.f32.partialorder %v119, %v121
    %v123 = vsel %vm122, %v118, inf
    %124 = vmin.xlane.f32.xlu0 %v123
    %v125 = vpop.xlane.xlu0 %124
    %v126 = vcvt.f32.s32 %v125
    %v127 = vcvt.f32.s32 %v121
    %v128 = vshll.u32 %v127, 16
    %v129 = vadd.s32 %v128, %v126
    %v130 = vand.u32 %v100, 65535
    %v131 = vshra.s32 %v100, 16
    %v132 = vcvt.s32.f32 %v130
    %v133 = vcvt.s32.f32 %v131
    %134 = vmin.xlane.f32.xlu0 %v133
    %v135 = vpop.xlane.xlu0 %134
    %vm136 = vcmp.eq.f32.partialorder %v133, %v135
    %v137 = vsel %vm136, %v132, inf
    %138 = vmin.xlane.f32.xlu0 %v137
    %v139 = vpop.xlane.xlu0 %138
    %v140 = vcvt.f32.s32 %v139
    %v141 = vcvt.f32.s32 %v135
    %v142 = vshll.u32 %v141, 16
    %v143 = vadd.s32 %v142, %v140
    %v144 = vand.u32 %v101, 65535
    %v145 = vshra.s32 %v101, 16
    %v146 = vcvt.s32.f32 %v144
    %v147 = vcvt.s32.f32 %v145
    %148 = vmin.xlane.f32.xlu0 %v147
    %v149 = vpop.xlane.xlu0 %148
    %vm150 = vcmp.eq.f32.partialorder %v147, %v149
    %v151 = vsel %vm150, %v146, inf
    %152 = vmin.xlane.f32.xlu0 %v151
    %v153 = vpop.xlane.xlu0 %152
    %v154 = vcvt.f32.s32 %v153
    %v155 = vcvt.f32.s32 %v149
    %v156 = vshll.u32 %v155, 16
    %v157 = vadd.s32 %v156, %v154
    %vm158 = vcmp.eq.s32.totalorder %v85, %v115
    %vm159 = vcmp.eq.s32.totalorder %v85, %v129
    %vm160 = vcmp.eq.s32.totalorder %v85, %v143
    %vm161 = vcmp.eq.s32.totalorder %v85, %v157
    %v162 = vsel %vm158, 1, 0
    %v163 = vsel %vm159, 1, 0
    %v164 = vsel %vm160, 1, 0
    %v165 = vsel %vm161, 1, 0
    %v166 = vcvt.s32.f32 %v162
    %v167 = vcvt.s32.f32 %v163
    %v168 = vcvt.s32.f32 %v164
    %v169 = vcvt.s32.f32 %v165
    %170 = vst [vmem:[#allocation7] sm:$0xff] %v166
    %171 = vst [vmem:[#allocation7 + $0x8] sm:$0xff] %v167
    %172 = vst [vmem:[#allocation7 + $0x10] sm:$0xff] %v168
    %173 = vst [vmem:[#allocation7 + $0x18] sm:$0xff] %v169
    // Predicated region
    $region18: #{tpu_custom_call.1} parent=1 // pred_check
      _
    $region19: #{tpu_custom_call.1} parent=1 // pred_check_branch
      %175 = sbr.rel (0) target = $region21
    $region20: #{tpu_custom_call.1} parent=1 // pred_region
      %177 = vsyncadd [#allocation4], 0
      %s178 = sshll.u32 [#allocation7], 4
      %s179 = int_to_ptr.vmem [resolvable:$true] %s178
      %s180 = sshll.u32 %s2, 4
      %s181 = int_to_ptr.hbm [resolvable:$true] %s180
      %186 = dma.vmem_to_hbm [thread:$0]  %s179, 512, %s181, [#allocation4], 128, 128, 8
    $region21: #{tpu_custom_call.1} parent=1 // pred_fallthru
      _
    // Predicated region
    $region22: #{tpu_custom_call.1} parent=1 // pred_check
      _
    $region23: #{tpu_custom_call.1} parent=1 // pred_check_branch
      %188 = sbr.rel (0) target = $region25
    $region24: #{tpu_custom_call.1} parent=1 // pred_region
      %190 = dma.done [#allocation4], 512
    $region25: #{tpu_custom_call.1} parent=1 // pred_fallthru
      _
    %191 = vsyncpa [#allocation3], 1
    %192 = vsyncpa [#allocation6], 1
    %193 = vsyncpa [#allocation4], 1

</llo_original>
